<compile_context>
chip_gen: v7x
topology: tpu7x:2x2x1
jax: 0.10.0
libtpu: 0.0.40
codegen_flags: <defaults>
</compile_context>

<pallas_src>
import jax
import jax.numpy as jnp
from jax.experimental import pallas as pl
from jax.experimental.pallas import tpu as pltpu


def _silence_noop_kernel(x_hbm_ref, o_hbm_ref):
    # The output buffer is aliased onto the input buffer: the data is already
    # in place, so there is nothing to compute and nothing to move.
    del x_hbm_ref, o_hbm_ref


def _silence_copy_kernel(x_hbm_ref, o_hbm_ref, sem):
    # Single whole-array HBM -> HBM DMA (no VMEM staging, no vector slots used).
    copy = pltpu.make_async_copy(x_hbm_ref, o_hbm_ref, sem)
    copy.start()
    copy.wait()


def silence_forward(x, *, copy=False):
    """Identity forward pass of the Silence module.

    copy=False (default): output aliases the input buffer -> zero HBM traffic.
    copy=True: materializes a distinct output buffer with one HBM->HBM DMA.
    """
    if x.size == 0:
        return x

    if not copy:
        return pl.pallas_call(
            _silence_noop_kernel,
            out_shape=jax.ShapeDtypeStruct(x.shape, x.dtype),
            in_specs=[pl.BlockSpec(memory_space=pl.ANY)],
            out_specs=pl.BlockSpec(memory_space=pl.ANY),
            input_output_aliases={0: 0},
        )(x)

    nbytes = x.size * x.dtype.itemsize
    return pl.pallas_call(
        _silence_copy_kernel,
        out_shape=jax.ShapeDtypeStruct(x.shape, x.dtype),
        in_specs=[pl.BlockSpec(memory_space=pl.ANY)],
        out_specs=pl.BlockSpec(memory_space=pl.ANY),
        scratch_shapes=[pltpu.SemaphoreType.DMA],
        compiler_params=pltpu.CompilerParams(has_side_effects=True),
        cost_estimate=pl.CostEstimate(
            flops=0, transcendentals=0, bytes_accessed=2 * nbytes),
    )(x)


if __name__ == "__main__":
    key = jax.random.PRNGKey(0)

    # Shapes consistent with the module's typical use: NCHW activations.
    N, C, H, W = 2, 4, 16, 16
    x = jax.random.normal(key, (N, C, H, W), jnp.float32)

    # Aliased (zero-traffic) identity path.
    out = jax.block_until_ready(silence_forward(x))
    assert out.shape == x.shape, out.shape
    assert out.dtype == x.dtype, out.dtype
    assert bool(jnp.all(out == x)), "Silence (aliased) output differs from input"

    # Physical-copy identity path (single HBM->HBM DMA).
    out_copy = jax.block_until_ready(silence_forward(x, copy=True))
    assert out_copy.shape == x.shape, out_copy.shape
    assert out_copy.dtype == x.dtype, out_copy.dtype
    assert bool(jnp.all(out_copy == x)), "Silence (copy) output differs from input"

    print("KERNEL_OK")
</pallas_src>

<mosaic_0001>
module attributes {stable_mosaic.version = 11 : i64} {
  func.func @_silence_noop_kernel(%arg0: memref<2x4x16x16xf32, #tpu.memory_space<any>>, %arg1: memref<2x4x16x16xf32, #tpu.memory_space<any>>) attributes {dimension_semantics = [], scalar_prefetch = 0 : i64, scratch_operands = 0 : i64, tpu.core_type = #tpu.core_type<tc>} {
    return
  }
}

</mosaic_0001>

<llo_original>
// kernel: tpu_custom_call.1
$region0: #{tpu_custom_call.1}
  #allocation0 [shape = 'u32[]', space=smem, size = 0x4, offset = 0x4, fixed_abs, tag = 'smem constant byte address 0x4 - core index']
  #allocation1 [shape = 'u32[144,128]{1,0:T(1,128)}', space=vmem, size = 0x12000, scoped, tag = 'internal scratch']
  %s0 = inlined_call_operand.hbm [shape: f32[2,4,16,16], index: 0, kind: input, shape index: {}, may-alias: {0,1}]
  %s1 = inlined_call_operand.hbm [shape: f32[2,4,16,16], index: 1, kind: output, shape index: {}, may-alias: {0,1}]
  %s2 = sld [smem:[#allocation0]]
  $region2: #{tpu_custom_call.1} parent=0
    _
  %s4 = ssub.s32 1, %s2
  %s5 = scalar_select 0, %s4, %s2

</llo_original>
